<compile_context>
chip_gen: v7x
topology: tpu7x:2x2x1
jax: 0.10.0
libtpu: 0.0.40
codegen_flags: <defaults>
</compile_context>

<pallas_src>
import functools

import jax
import jax.numpy as jnp
from jax.experimental import pallas as pl
from jax.experimental.pallas import tpu as pltpu


# ---------------------------------------------------------------------------
# Fused forward kernel (one invocation, everything resident in VMEM)
# ---------------------------------------------------------------------------

def _fused_forward_kernel(*refs, n_types, n_per_type, feat, raw, n_rel,
                          src_offsets, rows):
    """Whole forward pass in one kernel invocation.

    refs = (x_0 .. x_{T-1}, params_slab, out_0 .. out_{T-1}, xw_scratch)
    """
    f32 = jnp.float32
    x_refs = refs[:n_types]
    p = refs[n_types]
    o_refs = refs[n_types + 1: 2 * n_types + 1]
    xw = refs[2 * n_types + 1]

    nt = n_types * n_per_type
    rf = n_rel * feat
    rn = n_rel * n_per_type
    (o_wr, o_br, o_w1, o_b1, o_w2, o_b2, o_wi, o_bi, o_a) = rows

    # Static views into the single packed parameter slab (one DMA carried them all).
    wr = p[o_wr:o_wr + raw, 0:feat]       # (RAW, F)  dim_reduce weight
    br = p[o_br:o_br + 1, 0:feat]         # (1, F)    dim_reduce bias
    wc1 = p[o_w1:o_w1 + feat, 0:rf]       # (F, R*F)  lane-stacked per-relation W1
    b1 = p[o_b1:o_b1 + nt, 0:feat]        # (NT, F)   per-dst-type summed conv1 biases
    wc2 = p[o_w2:o_w2 + feat, 0:rf]       # (F, R*F)  lane-stacked per-relation W2
    b2 = p[o_b2:o_b2 + nt, 0:feat]        # (NT, F)   per-dst-type summed conv2 biases
    wi = p[o_wi:o_wi + feat, 0:raw]       # (F, RAW)  dim_increase weight
    bi = p[o_bi:o_bi + 1, 0:raw]          # (1, RAW)  dim_increase bias
    a_big = p[o_a:o_a + nt, 0:rn]         # (NT, R*N) block adjacency (dst rows x rel*src cols)

    # dim_reduce on all node types at once (in-register sublane concat is cheap and
    # keeps the per-call wrapper free of XLA ops).
    x_all = jnp.concatenate([x[...] for x in x_refs], axis=0)       # (NT, RAW)
    h0 = jnp.dot(x_all, wr, preferred_element_type=f32) + br        # (NT, F)

    def hetero_conv(h, wcat, b_sum):
        # One wide transform matmul (all relation weights lane-stacked), then one
        # aggregation matmul summing every relation's contribution per dst type.
        xw_all = jnp.dot(h, wcat, preferred_element_type=f32)       # (NT, R*F)
        # Repack (src-type rows, relation lanes) -> relation-stacked (R*N, F) with
        # direct stores into the VMEM scratch (no concatenate copy, Mosaic can
        # interleave the block stores).
        for r in range(n_rel):
            so = src_offsets[r]
            xw[r * n_per_type:(r + 1) * n_per_type, :] = (
                xw_all[so:so + n_per_type, r * feat:(r + 1) * feat])
        return jnp.dot(a_big, xw[...], preferred_element_type=f32) + b_sum

    # h = relu(conv1(g, x) + x);  h = conv2(g, h) + h
    h1 = jnp.maximum(hetero_conv(h0, wc1, b1) + h0, 0.0)
    h2 = hetero_conv(h1, wc2, b2) + h1

    # dim_increase, then write per-node-type outputs directly (no wrapper slices).
    out = jnp.dot(h2, wi, preferred_element_type=f32) + bi           # (NT, RAW)
    for t in range(n_types):
        o_refs[t][...] = out[t * n_per_type:(t + 1) * n_per_type, :].astype(
            o_refs[t].dtype)


def _build_fused_call(*, n_types, n_per_type, feat, raw, n_rel, src_offsets, rows):
    kernel = functools.partial(
        _fused_forward_kernel,
        n_types=n_types, n_per_type=n_per_type, feat=feat, raw=raw,
        n_rel=n_rel, src_offsets=tuple(src_offsets), rows=tuple(rows))
    vmem = pltpu.MemorySpace.VMEM
    # No grid: single invocation, all operands whole-array resident in VMEM.
    call = pl.pallas_call(
        kernel,
        out_shape=tuple(jax.ShapeDtypeStruct((n_per_type, raw), jnp.float32)
                        for _ in range(n_types)),
        in_specs=[pl.BlockSpec(memory_space=vmem)] * (n_types + 1),
        out_specs=tuple(pl.BlockSpec(memory_space=vmem) for _ in range(n_types)),
        scratch_shapes=[pltpu.VMEM((n_rel * n_per_type, feat), jnp.float32)],
    )
    return jax.jit(call)


# ---------------------------------------------------------------------------
# Model (parameters + one-time graph packing in plain JAX, compute in Pallas)
# ---------------------------------------------------------------------------

class HeteroGraphNNPallas:
    def __init__(self, key, raw_feats, in_feats, hid_feats, out_feats, rel_names):
        # residual adds in the reference forward require these equalities
        assert in_feats == hid_feats == out_feats
        self.raw_feats = raw_feats
        self.in_feats = in_feats
        ks = jax.random.split(key, 4 + len(rel_names))
        s = 0.1
        # TODO(synk): DimensionalityReductionNet / dimensionincrease architectures are
        # not given in the source; modeled as single Linear layers (raw->in, out->raw).
        self.Wr = jax.random.normal(ks[0], (raw_feats, in_feats), jnp.float32) * s
        self.br = jax.random.normal(ks[1], (in_feats,), jnp.float32) * s
        self.Wi = jax.random.normal(ks[2], (out_feats, raw_feats), jnp.float32) * s
        self.bi = jax.random.normal(ks[3], (raw_feats,), jnp.float32) * s
        self.W1, self.b1, self.W2, self.b2 = {}, {}, {}, {}
        for i, rel in enumerate(rel_names):
            k0, k1, k2, k3 = jax.random.split(ks[4 + i], 4)
            self.W1[rel] = jax.random.normal(k0, (in_feats, hid_feats), jnp.float32) * s
            self.b1[rel] = jax.random.normal(k1, (hid_feats,), jnp.float32) * s
            self.W2[rel] = jax.random.normal(k2, (hid_feats, out_feats), jnp.float32) * s
            self.b2[rel] = jax.random.normal(k3, (out_feats,), jnp.float32) * s
        self._pack_cache = {}

    def _pack(self, graph, inputs):
        """One-time (cached) packing of graph + params into the fused layout."""
        ckey = id(graph)
        if ckey in self._pack_cache:
            return self._pack_cache[ckey]

        ntypes = sorted(inputs.keys())
        n = next(iter(inputs.values())).shape[0]
        assert all(v.shape[0] == n for v in inputs.values())
        # Keep the per-node-type feature dicts complete across both conv layers
        # (matches the reference as long as every input type is a destination).
        dst_types = {dt for (_, _, dt, _) in graph}
        src_types = {st for (_, st, _, _) in graph}
        assert set(ntypes) == dst_types and src_types <= dst_types

        off = {t: i * n for i, t in enumerate(ntypes)}
        R, T = len(graph), len(ntypes)
        NT = T * n
        F, RAW = self.in_feats, self.raw_feats

        a_big = jnp.zeros((NT, R * n), jnp.float32)
        b1_full = jnp.zeros((NT, F), jnp.float32)
        b2_full = jnp.zeros((NT, F), jnp.float32)
        src_offsets, w1_blocks, w2_blocks = [], [], []
        for r, (rel, st, dt, a) in enumerate(graph):
            a_big = a_big.at[off[dt]:off[dt] + n, r * n:(r + 1) * n].set(a)
            src_offsets.append(off[st])
            w1_blocks.append(self.W1[rel])
            w2_blocks.append(self.W2[rel])
            # per-relation biases hoisted out of the aggregation (summed per dst type)
            b1_full = b1_full.at[off[dt]:off[dt] + n].add(self.b1[rel][None, :])
            b2_full = b2_full.at[off[dt]:off[dt] + n].add(self.b2[rel][None, :])
        wc1 = jnp.concatenate(w1_blocks, axis=1)   # (F, R*F) lane-stacked
        wc2 = jnp.concatenate(w2_blocks, axis=1)   # (F, R*F)

        # ---- pack ALL parameters (incl. block adjacency) into ONE padded f32 slab ---
        lanes = max(R * F, R * n, RAW, F)
        pieces = [self.Wr, self.br.reshape(1, F), wc1, b1_full, wc2, b2_full,
                  self.Wi, self.bi.reshape(1, RAW), a_big]
        rows, r0, padded = [], 0, []
        for piece in pieces:
            rows.append(r0)
            pad_r = (-piece.shape[0]) % 8            # keep every slice 8-row aligned
            padded.append(jnp.pad(piece, ((0, pad_r), (0, lanes - piece.shape[1]))))
            r0 += piece.shape[0] + pad_r
        slab = jnp.concatenate(padded, axis=0)        # (~240, 64) f32, one DMA

        fn = _build_fused_call(
            n_types=T, n_per_type=n, feat=F, raw=RAW, n_rel=R,
            src_offsets=src_offsets, rows=rows)

        packed = dict(ntypes=ntypes, slab=slab, fn=fn)
        self._pack_cache[ckey] = packed
        return packed

    def forward(self, graph, inputs):
        p = self._pack(graph, inputs)
        xs = [inputs[t] for t in p["ntypes"]]
        outs = p["fn"](*xs, p["slab"])     # single dispatch, zero wrapper XLA ops
        return dict(zip(p["ntypes"], outs))


# ---------------------------------------------------------------------------
# Pure-JAX reference (for numerical check) and graph utilities
# ---------------------------------------------------------------------------

def normalize_adj(a):
    # GraphConv norm='both': D_dst^{-1/2} A D_src^{-1/2}, zero degrees clamped to 1.
    out_deg = jnp.clip(a.sum(axis=0), 1.0)   # src out-degree
    in_deg = jnp.clip(a.sum(axis=1), 1.0)    # dst in-degree
    return a * (in_deg[:, None] ** -0.5) * (out_deg[None, :] ** -0.5)


def reference_forward(model, graph, inputs):
    x = {k: v @ model.Wr + model.br for k, v in inputs.items()}

    def layer(feats, W, b, res, relu):
        out = {}
        for (rel, st, dt, a) in graph:
            contrib = a @ (feats[st] @ W[rel]) + b[rel]
            out[dt] = out.get(dt, 0.0) + contrib
        out = {k: v + res[k] for k, v in out.items()}
        if relu:
            out = {k: jnp.maximum(v, 0.0) for k, v in out.items()}
        return out

    h1 = layer(x, model.W1, model.b1, x, True)
    h2 = layer(h1, model.W2, model.b2, h1, False)
    return {k: v @ model.Wi + model.bi for k, v in h2.items()}


# ---------------------------------------------------------------------------
# Main
# ---------------------------------------------------------------------------

if __name__ == "__main__":
    key = jax.random.PRNGKey(0)
    N = 16                      # nodes per node type
    RAW, IN, HID, OUT = 32, 16, 16, 16

    ntypes = ["disease", "drug", "gene"]
    rel_defs = [
        ("treats", "drug", "disease"),
        ("interacts", "drug", "drug"),
        ("associates", "gene", "disease"),
        ("targets", "drug", "gene"),
    ]
    rel_names = [r for (r, _, _) in rel_defs]

    keys = jax.random.split(key, 3 + len(rel_defs) + 1)

    inputs = {
        nt: jax.random.normal(keys[i], (N, RAW), dtype=jnp.float32)
        for i, nt in enumerate(ntypes)
    }

    graph = []
    for j, (rel, st, dt) in enumerate(rel_defs):
        a = (jax.random.uniform(keys[3 + j], (N, N)) < 0.3).astype(jnp.float32)
        graph.append((rel, st, dt, normalize_adj(a)))

    model = HeteroGraphNNPallas(keys[-1], RAW, IN, HID, OUT, rel_names)

    out = model.forward(graph, inputs)
    out = jax.block_until_ready(out)

    ref = reference_forward(model, graph, inputs)
    for k in out:
        assert out[k].shape == (N, RAW)
        assert jnp.allclose(out[k], ref[k], atol=1e-4, rtol=1e-4), k

    print("KERNEL_OK")
</pallas_src>

<mosaic_0001>
module attributes {stable_mosaic.version = 11 : i64} {
  func.func @_fused_forward_kernel(%arg0: memref<16x32xf32, #tpu.memory_space<vmem>>, %arg1: memref<16x32xf32, #tpu.memory_space<vmem>>, %arg2: memref<16x32xf32, #tpu.memory_space<vmem>>, %arg3: memref<240x64xf32, #tpu.memory_space<vmem>>, %arg4: memref<16x32xf32, #tpu.memory_space<vmem>>, %arg5: memref<16x32xf32, #tpu.memory_space<vmem>>, %arg6: memref<16x32xf32, #tpu.memory_space<vmem>>, %arg7: memref<64x16xf32, #tpu.memory_space<vmem>>) attributes {dimension_semantics = [], scalar_prefetch = 0 : i64, scratch_operands = 1 : i64, tpu.core_type = #tpu.core_type<tc>} {
    %c0 = arith.constant 0 : index
    %c0_0 = arith.constant 0 : index
    %0 = vector.load %arg3[%c0, %c0_0] : memref<240x64xf32, #tpu.memory_space<vmem>>, vector<32x16xf32>
    %c32 = arith.constant 32 : index
    %c0_1 = arith.constant 0 : index
    %1 = vector.load %arg3[%c32, %c0_1] : memref<240x64xf32, #tpu.memory_space<vmem>>, vector<1x16xf32>
    %c40 = arith.constant 40 : index
    %c0_2 = arith.constant 0 : index
    %2 = vector.load %arg3[%c40, %c0_2] : memref<240x64xf32, #tpu.memory_space<vmem>>, vector<16x64xf32>
    %c56 = arith.constant 56 : index
    %c0_3 = arith.constant 0 : index
    %3 = vector.load %arg3[%c56, %c0_3] : memref<240x64xf32, #tpu.memory_space<vmem>>, vector<48x16xf32>
    %c104 = arith.constant 104 : index
    %c0_4 = arith.constant 0 : index
    %4 = vector.load %arg3[%c104, %c0_4] : memref<240x64xf32, #tpu.memory_space<vmem>>, vector<16x64xf32>
    %c120 = arith.constant 120 : index
    %c0_5 = arith.constant 0 : index
    %5 = vector.load %arg3[%c120, %c0_5] : memref<240x64xf32, #tpu.memory_space<vmem>>, vector<48x16xf32>
    %c168 = arith.constant 168 : index
    %c0_6 = arith.constant 0 : index
    %6 = vector.load %arg3[%c168, %c0_6] : memref<240x64xf32, #tpu.memory_space<vmem>>, vector<16x32xf32>
    %c184 = arith.constant 184 : index
    %c0_7 = arith.constant 0 : index
    %7 = vector.load %arg3[%c184, %c0_7] : memref<240x64xf32, #tpu.memory_space<vmem>>, vector<1x32xf32>
    %c192 = arith.constant 192 : index
    %c0_8 = arith.constant 0 : index
    %8 = vector.load %arg3[%c192, %c0_8] : memref<240x64xf32, #tpu.memory_space<vmem>>, vector<48x64xf32>
    %c0_9 = arith.constant 0 : index
    %c0_10 = arith.constant 0 : index
    %9 = vector.load %arg0[%c0_9, %c0_10] : memref<16x32xf32, #tpu.memory_space<vmem>>, vector<16x32xf32>
    %c0_11 = arith.constant 0 : index
    %c0_12 = arith.constant 0 : index
    %10 = vector.load %arg1[%c0_11, %c0_12] : memref<16x32xf32, #tpu.memory_space<vmem>>, vector<16x32xf32>
    %c0_13 = arith.constant 0 : index
    %c0_14 = arith.constant 0 : index
    %11 = vector.load %arg2[%c0_13, %c0_14] : memref<16x32xf32, #tpu.memory_space<vmem>>, vector<16x32xf32>
    %12 = tpu.concatenate %9, %10, %11 in 0 : vector<16x32xf32>, vector<16x32xf32>, vector<16x32xf32> -> vector<48x32xf32>
    %cst = arith.constant dense<0.000000e+00> : vector<48x16xf32>
    %13 = tpu.matmul %12, %0, %cst {dimension_numbers = #tpu.dot_dimension_numbers<[1], [0], [0], [1], [0, 0, 1, 1], [], []>} : vector<48x32xf32>, vector<32x16xf32>, vector<48x16xf32> -> vector<48x16xf32>
    %14 = vector.broadcast %1 : vector<1x16xf32> to vector<48x16xf32>
    %15 = arith.addf %13, %14 : vector<48x16xf32>
    %cst_15 = arith.constant dense<0.000000e+00> : vector<48x64xf32>
    %16 = tpu.matmul %15, %2, %cst_15 {dimension_numbers = #tpu.dot_dimension_numbers<[1], [0], [0], [1], [0, 0, 1, 1], [], []>} : vector<48x16xf32>, vector<16x64xf32>, vector<48x64xf32> -> vector<48x64xf32>
    %17 = vector.extract_strided_slice %16 {offsets = [16, 0], sizes = [16, 16], strides = [1, 1]} : vector<48x64xf32> to vector<16x16xf32>
    %c0_16 = arith.constant 0 : index
    %c0_17 = arith.constant 0 : index
    %18 = vector.load %arg7[%c0_16, %c0_17] : memref<64x16xf32, #tpu.memory_space<vmem>>, vector<16x16xf32>
    tpu.vector_store %arg7[%c0_16, %c0_17], %17 {strides = array<i32>} : memref<64x16xf32, #tpu.memory_space<vmem>>, vector<16x16xf32>,
    %19 = vector.extract_strided_slice %16 {offsets = [16, 16], sizes = [16, 16], strides = [1, 1]} : vector<48x64xf32> to vector<16x16xf32>
    %c16 = arith.constant 16 : index
    %c0_18 = arith.constant 0 : index
    %20 = vector.load %arg7[%c16, %c0_18] : memref<64x16xf32, #tpu.memory_space<vmem>>, vector<16x16xf32>
    tpu.vector_store %arg7[%c16, %c0_18], %19 {strides = array<i32>} : memref<64x16xf32, #tpu.memory_space<vmem>>, vector<16x16xf32>,
    %21 = vector.extract_strided_slice %16 {offsets = [32, 32], sizes = [16, 16], strides = [1, 1]} : vector<48x64xf32> to vector<16x16xf32>
    %c32_19 = arith.constant 32 : index
    %c0_20 = arith.constant 0 : index
    %22 = vector.load %arg7[%c32_19, %c0_20] : memref<64x16xf32, #tpu.memory_space<vmem>>, vector<16x16xf32>
    tpu.vector_store %arg7[%c32_19, %c0_20], %21 {strides = array<i32>} : memref<64x16xf32, #tpu.memory_space<vmem>>, vector<16x16xf32>,
    %23 = vector.extract_strided_slice %16 {offsets = [16, 48], sizes = [16, 16], strides = [1, 1]} : vector<48x64xf32> to vector<16x16xf32>
    %c48 = arith.constant 48 : index
    %c0_21 = arith.constant 0 : index
    %24 = vector.load %arg7[%c48, %c0_21] : memref<64x16xf32, #tpu.memory_space<vmem>>, vector<16x16xf32>
    tpu.vector_store %arg7[%c48, %c0_21], %23 {strides = array<i32>} : memref<64x16xf32, #tpu.memory_space<vmem>>, vector<16x16xf32>,
    %c0_22 = arith.constant 0 : index
    %c0_23 = arith.constant 0 : index
    %25 = vector.load %arg7[%c0_22, %c0_23] : memref<64x16xf32, #tpu.memory_space<vmem>>, vector<64x16xf32>
    %cst_24 = arith.constant dense<0.000000e+00> : vector<48x16xf32>
    %26 = tpu.matmul %8, %25, %cst_24 {dimension_numbers = #tpu.dot_dimension_numbers<[1], [0], [0], [1], [0, 0, 1, 1], [], []>} : vector<48x64xf32>, vector<64x16xf32>, vector<48x16xf32> -> vector<48x16xf32>
    %27 = arith.addf %26, %3 : vector<48x16xf32>
    %28 = arith.addf %27, %15 : vector<48x16xf32>
    %cst_25 = arith.constant 0.000000e+00 : f32
    %29 = vector.broadcast %cst_25 : f32 to vector<48x16xf32>
    %30 = arith.maximumf %28, %29 : vector<48x16xf32>
    %cst_26 = arith.constant dense<0.000000e+00> : vector<48x64xf32>
    %31 = tpu.matmul %30, %4, %cst_26 {dimension_numbers = #tpu.dot_dimension_numbers<[1], [0], [0], [1], [0, 0, 1, 1], [], []>} : vector<48x16xf32>, vector<16x64xf32>, vector<48x64xf32> -> vector<48x64xf32>
    %32 = vector.extract_strided_slice %31 {offsets = [16, 0], sizes = [16, 16], strides = [1, 1]} : vector<48x64xf32> to vector<16x16xf32>
    %c0_27 = arith.constant 0 : index
    %c0_28 = arith.constant 0 : index
    %33 = vector.load %arg7[%c0_27, %c0_28] : memref<64x16xf32, #tpu.memory_space<vmem>>, vector<16x16xf32>
    tpu.vector_store %arg7[%c0_27, %c0_28], %32 {strides = array<i32>} : memref<64x16xf32, #tpu.memory_space<vmem>>, vector<16x16xf32>,
    %34 = vector.extract_strided_slice %31 {offsets = [16, 16], sizes = [16, 16], strides = [1, 1]} : vector<48x64xf32> to vector<16x16xf32>
    %c16_29 = arith.constant 16 : index
    %c0_30 = arith.constant 0 : index
    %35 = vector.load %arg7[%c16_29, %c0_30] : memref<64x16xf32, #tpu.memory_space<vmem>>, vector<16x16xf32>
    tpu.vector_store %arg7[%c16_29, %c0_30], %34 {strides = array<i32>} : memref<64x16xf32, #tpu.memory_space<vmem>>, vector<16x16xf32>,
    %36 = vector.extract_strided_slice %31 {offsets = [32, 32], sizes = [16, 16], strides = [1, 1]} : vector<48x64xf32> to vector<16x16xf32>
    %c32_31 = arith.constant 32 : index
    %c0_32 = arith.constant 0 : index
    %37 = vector.load %arg7[%c32_31, %c0_32] : memref<64x16xf32, #tpu.memory_space<vmem>>, vector<16x16xf32>
    tpu.vector_store %arg7[%c32_31, %c0_32], %36 {strides = array<i32>} : memref<64x16xf32, #tpu.memory_space<vmem>>, vector<16x16xf32>,
    %38 = vector.extract_strided_slice %31 {offsets = [16, 48], sizes = [16, 16], strides = [1, 1]} : vector<48x64xf32> to vector<16x16xf32>
    %c48_33 = arith.constant 48 : index
    %c0_34 = arith.constant 0 : index
    %39 = vector.load %arg7[%c48_33, %c0_34] : memref<64x16xf32, #tpu.memory_space<vmem>>, vector<16x16xf32>
    tpu.vector_store %arg7[%c48_33, %c0_34], %38 {strides = array<i32>} : memref<64x16xf32, #tpu.memory_space<vmem>>, vector<16x16xf32>,
    %c0_35 = arith.constant 0 : index
    %c0_36 = arith.constant 0 : index
    %40 = vector.load %arg7[%c0_35, %c0_36] : memref<64x16xf32, #tpu.memory_space<vmem>>, vector<64x16xf32>
    %cst_37 = arith.constant dense<0.000000e+00> : vector<48x16xf32>
    %41 = tpu.matmul %8, %40, %cst_37 {dimension_numbers = #tpu.dot_dimension_numbers<[1], [0], [0], [1], [0, 0, 1, 1], [], []>} : vector<48x64xf32>, vector<64x16xf32>, vector<48x16xf32> -> vector<48x16xf32>
    %42 = arith.addf %41, %5 : vector<48x16xf32>
    %43 = arith.addf %42, %30 : vector<48x16xf32>
    %cst_38 = arith.constant dense<0.000000e+00> : vector<48x32xf32>
    %44 = tpu.matmul %43, %6, %cst_38 {dimension_numbers = #tpu.dot_dimension_numbers<[1], [0], [0], [1], [0, 0, 1, 1], [], []>} : vector<48x16xf32>, vector<16x32xf32>, vector<48x32xf32> -> vector<48x32xf32>
    %45 = vector.broadcast %7 : vector<1x32xf32> to vector<48x32xf32>
    %46 = arith.addf %44, %45 : vector<48x32xf32>
    %47 = vector.extract_strided_slice %46 {offsets = [0, 0], sizes = [16, 32], strides = [1, 1]} : vector<48x32xf32> to vector<16x32xf32>
    %c0_39 = arith.constant 0 : index
    %c0_40 = arith.constant 0 : index
    %48 = vector.load %arg4[%c0_39, %c0_40] : memref<16x32xf32, #tpu.memory_space<vmem>>, vector<16x32xf32>
    tpu.vector_store %arg4[%c0_39, %c0_40], %47 {strides = array<i32>} : memref<16x32xf32, #tpu.memory_space<vmem>>, vector<16x32xf32>,
    %49 = vector.extract_strided_slice %46 {offsets = [16, 0], sizes = [16, 32], strides = [1, 1]} : vector<48x32xf32> to vector<16x32xf32>
    %c0_41 = arith.constant 0 : index
    %c0_42 = arith.constant 0 : index
    %50 = vector.load %arg5[%c0_41, %c0_42] : memref<16x32xf32, #tpu.memory_space<vmem>>, vector<16x32xf32>
    tpu.vector_store %arg5[%c0_41, %c0_42], %49 {strides = array<i32>} : memref<16x32xf32, #tpu.memory_space<vmem>>, vector<16x32xf32>,
    %51 = vector.extract_strided_slice %46 {offsets = [32, 0], sizes = [16, 32], strides = [1, 1]} : vector<48x32xf32> to vector<16x32xf32>
    %c0_43 = arith.constant 0 : index
    %c0_44 = arith.constant 0 : index
    %52 = vector.load %arg6[%c0_43, %c0_44] : memref<16x32xf32, #tpu.memory_space<vmem>>, vector<16x32xf32>
    tpu.vector_store %arg6[%c0_43, %c0_44], %51 {strides = array<i32>} : memref<16x32xf32, #tpu.memory_space<vmem>>, vector<16x32xf32>,
    return
  }
}

</mosaic_0001>

<llo_original>
// kernel: tpu_custom_call.1
$region0: #{tpu_custom_call.1}
  #allocation0 [shape = 'u32[]', space=smem, size = 0x4, offset = 0x4, fixed_abs, tag = 'smem constant byte address 0x4 - core index']
  #allocation1 [shape = 'u32[144,128]{1,0:T(1,128)}', space=vmem, size = 0x12000, scoped, tag = 'internal scratch']
  #allocation2 [shape = 'f32[64,16]{1,0:T(8,128)}', space=vmem, size = 0x8000, scoped, tag = 'scratch operand']
  %s0 = inlined_call_operand.vmem [shape: f32[16,32], index: 0, kind: input, shape index: {}]
  %s1 = inlined_call_operand.vmem [shape: f32[16,32], index: 1, kind: input, shape index: {}]
  %s2 = inlined_call_operand.vmem [shape: f32[16,32], index: 2, kind: input, shape index: {}]
  %s3 = inlined_call_operand.vmem [shape: f32[240,64], index: 3, kind: input, shape index: {}]
  %s4 = inlined_call_operand.hbm [shape: f32[16,32], index: 4, kind: output, shape index: {0}]
  %s5 = inlined_call_operand.hbm [shape: f32[16,32], index: 5, kind: output, shape index: {1}]
  %s6 = inlined_call_operand.hbm [shape: f32[16,32], index: 6, kind: output, shape index: {2}]
  %7 = xla_tuple %s4, %s5, %s6
  %s8 = sld [smem:[#allocation0]]
  $region42: #{tpu_custom_call.1} parent=0
    _
  %s10 = ssub.s32 1, %s8
  %s11 = scalar_select 0, %s10, %s8
  $region1: #{tpu_custom_call.1} parent=0
    #allocation3 [shape = 'u8[8192]{0}', space=vmem, size = 0x2000, scoped, tag = 'output window, operand 0, single buffered']
    #allocation4 [shape = 's32[1]{0}', space=sflag, size = 0x4, scoped, tag = 'scoped memory for tpu_custom_call.1']
    #allocation5 [shape = 'u8[8192]{0}', space=vmem, size = 0x2000, scoped, tag = 'output window, operand 1, single buffered']
    #allocation6 [shape = 's32[1]{0}', space=sflag, size = 0x4, scoped, tag = 'scoped memory for tpu_custom_call.1']
    #allocation7 [shape = 'u8[8192]{0}', space=vmem, size = 0x2000, scoped, tag = 'output window, operand 2, single buffered']
    %12 = vsyncpa [#allocation4], 0
    %13 = vsyncpa [#allocation6], 0
    // Predicated region
    $region2: #{tpu_custom_call.1} parent=1 // pred_check
      _
    $region3: #{tpu_custom_call.1} parent=1 // pred_check_branch
      %15 = sbr.rel (0) target = $region5
    $region4: #{tpu_custom_call.1} parent=1 // pred_region
      _
    $region5: #{tpu_custom_call.1} parent=1 // pred_fallthru
      _
    // Predicated region
    $region6: #{tpu_custom_call.1} parent=1 // pred_check
      _
    $region7: #{tpu_custom_call.1} parent=1 // pred_check_branch
      %17 = sbr.rel (0) target = $region9
    $region8: #{tpu_custom_call.1} parent=1 // pred_region
      _
    $region9: #{tpu_custom_call.1} parent=1 // pred_fallthru
      _
    // Predicated region
    $region10: #{tpu_custom_call.1} parent=1 // pred_check
      _
    $region11: #{tpu_custom_call.1} parent=1 // pred_check_branch
      %19 = sbr.rel (0) target = $region13
    $region12: #{tpu_custom_call.1} parent=1 // pred_region
      _
    $region13: #{tpu_custom_call.1} parent=1 // pred_fallthru
      _
    // Predicated region
    $region14: #{tpu_custom_call.1} parent=1 // pred_check
      _
    $region15: #{tpu_custom_call.1} parent=1 // pred_check_branch
      %21 = sbr.rel (0) target = $region17
    $region16: #{tpu_custom_call.1} parent=1 // pred_region
      _
    $region17: #{tpu_custom_call.1} parent=1 // pred_fallthru
      _
    %v22 = vld [vmem:[%s3] sm:$0xff]
    %v23 = vld [vmem:[%s3 + $0x8] sm:$0xff]
    %v24 = vld [vmem:[%s3 + $0x10] sm:$0xff]
    %v25 = vld [vmem:[%s3 + $0x18] sm:$0xff]
    %v26 = vld [vmem:[%s3 + $0x20] sm:$0x1]
    %v27 = vld [vmem:[%s3 + $0x28] sm:$0xff]
    %v28 = vld [vmem:[%s3 + $0x30] sm:$0xff]
    %v29 = vld [vmem:[%s3 + $0x38] sm:$0xff]
    %v30 = vld [vmem:[%s3 + $0x40] sm:$0xff]
    %v31 = vld [vmem:[%s3 + $0x48] sm:$0xff]
    %v32 = vld [vmem:[%s3 + $0x50] sm:$0xff]
    %v33 = vld [vmem:[%s3 + $0x58] sm:$0xff]
    %v34 = vld [vmem:[%s3 + $0x60] sm:$0xff]
    %v35 = vld [vmem:[%s3 + $0x68] sm:$0xff]
    %v36 = vld [vmem:[%s3 + $0x70] sm:$0xff]
    %v37 = vld [vmem:[%s3 + $0x78] sm:$0xff]
    %v38 = vld [vmem:[%s3 + $0x80] sm:$0xff]
    %v39 = vld [vmem:[%s3 + $0x88] sm:$0xff]
    %v40 = vld [vmem:[%s3 + $0x90] sm:$0xff]
    %v41 = vld [vmem:[%s3 + $0x98] sm:$0xff]
    %v42 = vld [vmem:[%s3 + $0xa0] sm:$0xff]
    %v43 = vld [vmem:[%s3 + $0xa8] sm:$0xff]
    %v44 = vld [vmem:[%s3 + $0xb0] sm:$0xff]
    %v45 = vld [vmem:[%s3 + $0xb8] sm:$0x1]
    %v46 = vld [vmem:[%s3 + $0xc0] sm:$0xff]
    %v47 = vld [vmem:[%s3 + $0xc8] sm:$0xff]
    %v48 = vld [vmem:[%s3 + $0xd0] sm:$0xff]
    %v49 = vld [vmem:[%s3 + $0xd8] sm:$0xff]
    %v50 = vld [vmem:[%s3 + $0xe0] sm:$0xff]
    %v51 = vld [vmem:[%s3 + $0xe8] sm:$0xff]
    %v52 = vld [vmem:[%s0] sm:$0xff]
    %v53 = vld [vmem:[%s0 + $0x8] sm:$0xff]
    %v54 = vld [vmem:[%s1] sm:$0xff]
    %v55 = vld [vmem:[%s1 + $0x8] sm:$0xff]
    %v56 = vld [vmem:[%s2] sm:$0xff]
    %v57 = vld [vmem:[%s2 + $0x8] sm:$0xff]
    %v58 = vlaneseq
    %v59 = vshrl.u32 %v58, 7
    %v60 = vsub.s32 0, %v59
    %v61 = vrot.slane %v26, %v60
    %vm62 = vcmask 261120
    %v64 = vsel %vm62, %v52, 0
    %v67 = vsel %vm62, %v53, 0
    %v70 = vsel %vm62, %v54, 0
    %v73 = vsel %vm62, %v55, 0
    %v76 = vsel %vm62, %v56, 0
    %v79 = vsel %vm62, %v57, 0
    %81 = vmatprep.subr.mxu0 0.0
    %82 = vmatpush1.msra.mxu0 %v22
    %83 = vmatprep.subr.mxu0 0.0
    %84 = vmatpush1.msra.mxu0 %v23
    %85 = vmatprep.subr.mxu0 0.0
    %86 = vmatpush1.msra.mxu0 %v24
    %87 = vmatprep.subr.mxu0 0.0
    %88 = vmatpush1.msra.mxu0 %v25
    %89 = vmatprep.subr.mxu0 0.0
    %90 = vmatpush1.msra.mxu0 0.0
    %91 = vmatprep.subr.mxu0 0.0
    %92 = vmatpush1.msra.mxu0 0.0
    %93 = vmatprep.subr.mxu0 0.0
    %94 = vmatpush1.msra.mxu0 0.0
    %95 = vmatprep.subr.mxu0 0.0
    %96 = vmatpush1.msra.mxu0 0.0
    %97 = vmatprep.subr.mxu0 0.0
    %98 = vmatpush1.msra.mxu0 0.0
    %99 = vmatprep.subr.mxu0 0.0
    %100 = vmatpush1.msra.mxu0 0.0
    %101 = vmatprep.subr.mxu0 0.0
    %102 = vmatpush1.msra.mxu0 0.0
    %103 = vmatprep.subr.mxu0 0.0
    %104 = vmatpush1.msra.mxu0 0.0
    %105 = vmatprep.subr.mxu0 0.0
    %106 = vmatpush1.msra.mxu0 0.0
    %107 = vmatprep.subr.mxu0 0.0
    %108 = vmatpush1.msra.mxu0 0.0
    %109 = vmatprep.subr.mxu0 0.0
    %110 = vmatpush1.msra.mxu0 0.0
    %111 = vmatprep.subr.mxu0 0.0
    %112 = vmatpush1.msra.mxu0 0.0
    %113 = vmatprep.subr.mxu0 0.0
    %114 = vmatpush1.msra.mxu0 0.0
    %115 = vmatprep.subr.mxu0 0.0
    %116 = vmatpush1.msra.mxu0 0.0
    %117 = vmatprep.subr.mxu0 0.0
    %118 = vmatpush1.msra.mxu0 0.0
    %119 = vmatprep.subr.mxu0 0.0
    %120 = vmatpush1.msra.mxu0 0.0
    %121 = vmatprep.subr.mxu0 0.0
    %122 = vmatpush1.msra.mxu0 0.0
    %123 = vmatprep.subr.mxu0 0.0
    %124 = vmatpush1.msra.mxu0 0.0
    %125 = vmatprep.subr.mxu0 0.0
    %126 = vmatpush1.msra.mxu0 0.0
    %127 = vmatprep.subr.mxu0 0.0
    %128 = vmatpush1.msra.mxu0 0.0
    %129 = vmatprep.subr.mxu0 0.0
    %130 = vmatpush1.msra.mxu0 0.0
    %131 = vmatprep.subr.mxu0 0.0
    %132 = vmatpush1.msra.mxu0 0.0
    %133 = vmatprep.subr.mxu0 0.0
    %134 = vmatpush1.msra.mxu0 0.0
    %135 = vmatprep.subr.mxu0 0.0
    %136 = vmatpush1.msra.mxu0 0.0
    %137 = vmatprep.subr.mxu0 0.0
    %138 = vmatpush1.msra.mxu0 0.0
    %139 = vmatprep.subr.mxu0 0.0
    %140 = vmatpush1.msra.mxu0 0.0
    %141 = vmatprep.subr.mxu0 0.0
    %142 = vmatpush1.msra.mxu0 0.0
    %143 = vmatprep.subr.mxu0 0.0
    %144 = vmatpush1.msra.mxu0 0.0
    %145 = vmatprep.mubr.f32.mxu0 0.0
    %146 = vmatmul.mubr.f32.gmra.mrb[0].mxu0 %v64
    %v147 = vpop.f32.mrb[0].mxu0
    %v148 = vadd.f32 %v61, %v147
    %v149 = vpop.f32.mrb[0].mxu0
    %150 = vmatprep.mubr.f32.mxu0 0.0
    %151 = vmatmul.mubr.f32.gmra.mrb[0].mxu0 %v67
    %v152 = vpop.f32.mrb[0].mxu0
    %v153 = vadd.f32 %v61, %v152
    %v154 = vpop.f32.mrb[0].mxu0
    %155 = vmatprep.mubr.f32.mxu0 0.0
    %156 = vmatmul.mubr.f32.gmra.mrb[0].mxu0 %v70
    %v157 = vpop.f32.mrb[0].mxu0
    %v158 = vadd.f32 %v61, %v157
    %v159 = vpop.f32.mrb[0].mxu0
    %160 = vmatprep.mubr.f32.mxu0 0.0
    %161 = vmatmul.mubr.f32.gmra.mrb[0].mxu0 %v73
    %v162 = vpop.f32.mrb[0].mxu0
    %v163 = vadd.f32 %v61, %v162
    %v164 = vpop.f32.mrb[0].mxu0
    %165 = vmatprep.mubr.f32.mxu0 0.0
    %166 = vmatmul.mubr.f32.gmra.mrb[0].mxu0 %v76
    %v167 = vpop.f32.mrb[0].mxu0
    %v168 = vadd.f32 %v61, %v167
    %v169 = vpop.f32.mrb[0].mxu0
    %170 = vmatprep.mubr.f32.mxu0 0.0
    %171 = vmatmul.mubr.f32.gmra.mrb[0].mxu0 %v79
    %v172 = vpop.f32.mrb[0].mxu0
    %v173 = vadd.f32 %v61, %v172
    %v174 = vpop.f32.mrb[0].mxu0
    %175 = vdwg.mxu0
    %vm176 = vcmask 130048
    %v178 = vsel %vm176, %v148, 0
    %v181 = vsel %vm176, %v153, 0
    %v184 = vsel %vm176, %v158, 0
    %v187 = vsel %vm176, %v163, 0
    %v190 = vsel %vm176, %v168, 0
    %v193 = vsel %vm176, %v173, 0
    %195 = vmatprep.subr.mxu0 0.0
    %196 = vmatpush1.msra.mxu0 %v27
    %197 = vmatprep.subr.mxu0 0.0
    %198 = vmatpush1.msra.mxu0 %v28
    %199 = vmatprep.subr.mxu0 0.0
    %200 = vmatpush1.msra.mxu0 0.0
    %201 = vmatprep.subr.mxu0 0.0
    %202 = vmatpush1.msra.mxu0 0.0
    %203 = vmatprep.subr.mxu0 0.0
    %204 = vmatpush1.msra.mxu0 0.0
    %205 = vmatprep.subr.mxu0 0.0
    %206 = vmatpush1.msra.mxu0 0.0
    %207 = vmatprep.subr.mxu0 0.0
    %208 = vmatpush1.msra.mxu0 0.0
    %209 = vmatprep.subr.mxu0 0.0
    %210 = vmatpush1.msra.mxu0 0.0
    %211 = vmatprep.subr.mxu0 0.0
    %212 = vmatpush1.msra.mxu0 0.0
    %213 = vmatprep.subr.mxu0 0.0
    %214 = vmatpush1.msra.mxu0 0.0
    %215 = vmatprep.subr.mxu0 0.0
    %216 = vmatpush1.msra.mxu0 0.0
    %217 = vmatprep.subr.mxu0 0.0
    %218 = vmatpush1.msra.mxu0 0.0
    %219 = vmatprep.subr.mxu0 0.0
    %220 = vmatpush1.msra.mxu0 0.0
    %221 = vmatprep.subr.mxu0 0.0
    %222 = vmatpush1.msra.mxu0 0.0
    %223 = vmatprep.subr.mxu0 0.0
    %224 = vmatpush1.msra.mxu0 0.0
    %225 = vmatprep.subr.mxu0 0.0
    %226 = vmatpush1.msra.mxu0 0.0
    %227 = vmatprep.subr.mxu0 0.0
    %228 = vmatpush1.msra.mxu0 0.0
    %229 = vmatprep.subr.mxu0 0.0
    %230 = vmatpush1.msra.mxu0 0.0
    %231 = vmatprep.subr.mxu0 0.0
    %232 = vmatpush1.msra.mxu0 0.0
    %233 = vmatprep.subr.mxu0 0.0
    %234 = vmatpush1.msra.mxu0 0.0
    %235 = vmatprep.subr.mxu0 0.0
    %236 = vmatpush1.msra.mxu0 0.0
    %237 = vmatprep.subr.mxu0 0.0
    %238 = vmatpush1.msra.mxu0 0.0
    %239 = vmatprep.subr.mxu0 0.0
    %240 = vmatpush1.msra.mxu0 0.0
    %241 = vmatprep.subr.mxu0 0.0
    %242 = vmatpush1.msra.mxu0 0.0
    %243 = vmatprep.subr.mxu0 0.0
    %244 = vmatpush1.msra.mxu0 0.0
    %245 = vmatprep.subr.mxu0 0.0
    %246 = vmatpush1.msra.mxu0 0.0
    %247 = vmatprep.subr.mxu0 0.0
    %248 = vmatpush1.msra.mxu0 0.0
    %249 = vmatprep.subr.mxu0 0.0
    %250 = vmatpush1.msra.mxu0 0.0
    %251 = vmatprep.subr.mxu0 0.0
    %252 = vmatpush1.msra.mxu0 0.0
    %253 = vmatprep.subr.mxu0 0.0
    %254 = vmatpush1.msra.mxu0 0.0
    %255 = vmatprep.subr.mxu0 0.0
    %256 = vmatpush1.msra.mxu0 0.0
    %257 = vmatprep.subr.mxu0 0.0
    %258 = vmatpush1.msra.mxu0 0.0
    %259 = vmatprep.mubr.f32.mxu0 0.0
    %260 = vmatmul.mubr.f32.gmra.mrb[0].mxu0 %v178
    %v261 = vpop.f32.mrb[0].mxu0
    %v262 = vpop.f32.mrb[0].mxu0
    %263 = vmatprep.mubr.f32.mxu0 0.0
    %264 = vmatmul.mubr.f32.gmra.mrb[0].mxu0 %v181
    %v265 = vpop.f32.mrb[0].mxu0
    %v266 = vpop.f32.mrb[0].mxu0
    %267 = vmatprep.mubr.f32.mxu0 0.0
    %268 = vmatmul.mubr.f32.gmra.mrb[0].mxu0 %v184
    %v269 = vpop.f32.mrb[0].mxu0
    %v270 = vadd.f32 0.0, %v269
    %v271 = vpop.f32.mrb[0].mxu0
    %272 = vmatprep.mubr.f32.mxu0 0.0
    %273 = vmatmul.mubr.f32.gmra.mrb[0].mxu0 %v187
    %v274 = vpop.f32.mrb[0].mxu0
    %v275 = vadd.f32 0.0, %v274
    %v276 = vpop.f32.mrb[0].mxu0
    %277 = vmatprep.mubr.f32.mxu0 0.0
    %278 = vmatmul.mubr.f32.gmra.mrb[0].mxu0 %v190
    %v279 = vpop.f32.mrb[0].mxu0
    %v280 = vadd.f32 0.0, %v279
    %v281 = vpop.f32.mrb[0].mxu0
    %282 = vmatprep.mubr.f32.mxu0 0.0
    %283 = vmatmul.mubr.f32.gmra.mrb[0].mxu0 %v193
    %v284 = vpop.f32.mrb[0].mxu0
    %v285 = vadd.f32 0.0, %v284
    %v286 = vpop.f32.mrb[0].mxu0
    %287 = vdwg.mxu0
    %288 = vst.msk [vmem:[#allocation2] sm:$0xff] %vm176, %v270
    %289 = vst.msk [vmem:[#allocation2 + $0x8] sm:$0xff] %vm176, %v275
    %292 = vrot.lane.b32.xlu0 %v270, 112
    %v293 = vpop.permute.xlu0 %292
    %294 = vrot.lane.b32.xlu0 %v275, 112
    %v295 = vpop.permute.xlu0 %294
    %298 = vst.msk [vmem:[#allocation2 + $0x10] sm:$0xff] %vm176, %v293
    %299 = vst.msk [vmem:[#allocation2 + $0x18] sm:$0xff] %vm176, %v295
    %302 = vrot.lane.b32.xlu0 %v280, 96
    %v303 = vpop.permute.xlu0 %302
    %304 = vrot.lane.b32.xlu0 %v285, 96
    %v305 = vpop.permute.xlu0 %304
    %308 = vst.msk [vmem:[#allocation2 + $0x20] sm:$0xff] %vm176, %v303
    %309 = vst.msk [vmem:[#allocation2 + $0x28] sm:$0xff] %vm176, %v305
    %310 = vrot.lane.b32.xlu0 %v270, 80
    %v311 = vpop.permute.xlu0 %310
    %312 = vrot.lane.b32.xlu0 %v275, 80
    %v313 = vpop.permute.xlu0 %312
    %316 = vst.msk [vmem:[#allocation2 + $0x30] sm:$0xff] %vm176, %v311
    %317 = vst.msk [vmem:[#allocation2 + $0x38] sm:$0xff] %vm176, %v313
    %v318 = vld [vmem:[#allocation2] sm:$0xff]
    %v319 = vld [vmem:[#allocation2 + $0x8] sm:$0xff]
    %v320 = vld [vmem:[#allocation2 + $0x10] sm:$0xff]
    %v321 = vld [vmem:[#allocation2 + $0x18] sm:$0xff]
    %v322 = vld [vmem:[#allocation2 + $0x20] sm:$0xff]
    %v323 = vld [vmem:[#allocation2 + $0x28] sm:$0xff]
    %v324 = vld [vmem:[#allocation2 + $0x30] sm:$0xff]
    %v325 = vld [vmem:[#allocation2 + $0x38] sm:$0xff]
    %vm326 = vcmask 523264
    %v328 = vsel %vm326, %v46, 0
    %v331 = vsel %vm326, %v47, 0
    %v334 = vsel %vm326, %v48, 0
    %v337 = vsel %vm326, %v49, 0
    %v340 = vsel %vm326, %v50, 0
    %v343 = vsel %vm326, %v51, 0
    %345 = vmatprep.subr.mxu0 0.0
    %346 = vmatpush1.msra.mxu0 %v318
    %347 = vmatprep.subr.mxu0 0.0
    %348 = vmatpush1.msra.mxu0 %v319
    %349 = vmatprep.subr.mxu0 0.0
    %350 = vmatpush1.msra.mxu0 %v320
    %351 = vmatprep.subr.mxu0 0.0
    %352 = vmatpush1.msra.mxu0 %v321
    %353 = vmatprep.subr.mxu0 0.0
    %354 = vmatpush1.msra.mxu0 %v322
    %355 = vmatprep.subr.mxu0 0.0
    %356 = vmatpush1.msra.mxu0 %v323
    %357 = vmatprep.subr.mxu0 0.0
    %358 = vmatpush1.msra.mxu0 %v324
    %359 = vmatprep.subr.mxu0 0.0
    %360 = vmatpush1.msra.mxu0 %v325
    %361 = vmatprep.subr.mxu0 0.0
    %362 = vmatpush1.msra.mxu0 0.0
    %363 = vmatprep.subr.mxu0 0.0
    %364 = vmatpush1.msra.mxu0 0.0
    %365 = vmatprep.subr.mxu0 0.0
    %366 = vmatpush1.msra.mxu0 0.0
    %367 = vmatprep.subr.mxu0 0.0
    %368 = vmatpush1.msra.mxu0 0.0
    %369 = vmatprep.subr.mxu0 0.0
    %370 = vmatpush1.msra.mxu0 0.0
    %371 = vmatprep.subr.mxu0 0.0
    %372 = vmatpush1.msra.mxu0 0.0
    %373 = vmatprep.subr.mxu0 0.0
    %374 = vmatpush1.msra.mxu0 0.0
    %375 = vmatprep.subr.mxu0 0.0
    %376 = vmatpush1.msra.mxu0 0.0
    %377 = vmatprep.subr.mxu0 0.0
    %378 = vmatpush1.msra.mxu0 0.0
    %379 = vmatprep.subr.mxu0 0.0
    %380 = vmatpush1.msra.mxu0 0.0
    %381 = vmatprep.subr.mxu0 0.0
    %382 = vmatpush1.msra.mxu0 0.0
    %383 = vmatprep.subr.mxu0 0.0
    %384 = vmatpush1.msra.mxu0 0.0
    %385 = vmatprep.subr.mxu0 0.0
    %386 = vmatpush1.msra.mxu0 0.0
    %387 = vmatprep.subr.mxu0 0.0
    %388 = vmatpush1.msra.mxu0 0.0
    %389 = vmatprep.subr.mxu0 0.0
    %390 = vmatpush1.msra.mxu0 0.0
    %391 = vmatprep.subr.mxu0 0.0
    %392 = vmatpush1.msra.mxu0 0.0
    %393 = vmatprep.subr.mxu0 0.0
    %394 = vmatpush1.msra.mxu0 0.0
    %395 = vmatprep.subr.mxu0 0.0
    %396 = vmatpush1.msra.mxu0 0.0
    %397 = vmatprep.subr.mxu0 0.0
    %398 = vmatpush1.msra.mxu0 0.0
    %399 = vmatprep.subr.mxu0 0.0
    %400 = vmatpush1.msra.mxu0 0.0
    %401 = vmatprep.subr.mxu0 0.0
    %402 = vmatpush1.msra.mxu0 0.0
    %403 = vmatprep.subr.mxu0 0.0
    %404 = vmatpush1.msra.mxu0 0.0
    %405 = vmatprep.subr.mxu0 0.0
    %406 = vmatpush1.msra.mxu0 0.0
    %407 = vmatprep.subr.mxu0 0.0
    %408 = vmatpush1.msra.mxu0 0.0
    %409 = vmatprep.mubr.f32.mxu0 0.0
    %410 = vmatmul.mubr.f32.gmra.mrb[0].mxu0 %v328
    %v411 = vpop.f32.mrb[0].mxu0
    %v412 = vadd.f32 %v29, %v411
    %v413 = vpop.f32.mrb[0].mxu0
    %414 = vmatprep.mubr.f32.mxu0 0.0
    %415 = vmatmul.mubr.f32.gmra.mrb[0].mxu0 %v331
    %v416 = vpop.f32.mrb[0].mxu0
    %v417 = vadd.f32 %v30, %v416
    %v418 = vpop.f32.mrb[0].mxu0
    %419 = vmatprep.mubr.f32.mxu0 0.0
    %420 = vmatmul.mubr.f32.gmra.mrb[0].mxu0 %v334
    %v421 = vpop.f32.mrb[0].mxu0
    %v422 = vadd.f32 %v31, %v421
    %v423 = vpop.f32.mrb[0].mxu0
    %424 = vmatprep.mubr.f32.mxu0 0.0
    %425 = vmatmul.mubr.f32.gmra.mrb[0].mxu0 %v337
    %v426 = vpop.f32.mrb[0].mxu0
    %v427 = vadd.f32 %v32, %v426
    %v428 = vpop.f32.mrb[0].mxu0
    %429 = vmatprep.mubr.f32.mxu0 0.0
    %430 = vmatmul.mubr.f32.gmra.mrb[0].mxu0 %v340
    %v431 = vpop.f32.mrb[0].mxu0
    %v432 = vadd.f32 %v33, %v431
    %v433 = vpop.f32.mrb[0].mxu0
    %434 = vmatprep.mubr.f32.mxu0 0.0
    %435 = vmatmul.mubr.f32.gmra.mrb[0].mxu0 %v343
    %v436 = vpop.f32.mrb[0].mxu0
    %v437 = vadd.f32 %v34, %v436
    %v438 = vpop.f32.mrb[0].mxu0
    %439 = vdwg.mxu0
    %v440 = vadd.f32 %v412, %v148
    %v441 = vadd.f32 %v417, %v153
    %v442 = vadd.f32 %v422, %v158
    %v443 = vadd.f32 %v427, %v163
    %v444 = vadd.f32 %v432, %v168
    %v445 = vadd.f32 %v437, %v173
    %v446 = vmax.f32 %v440, 0.0
    %v447 = vmax.f32 %v441, 0.0
    %v448 = vmax.f32 %v442, 0.0
    %v449 = vmax.f32 %v443, 0.0
    %v450 = vmax.f32 %v444, 0.0
    %v451 = vmax.f32 %v445, 0.0
    %v453 = vsel %vm176, %v446, 0
    %v456 = vsel %vm176, %v447, 0
    %v459 = vsel %vm176, %v448, 0
    %v462 = vsel %vm176, %v449, 0
    %v465 = vsel %vm176, %v450, 0
    %v468 = vsel %vm176, %v451, 0
    %470 = vmatprep.subr.mxu0 0.0
    %471 = vmatpush1.msra.mxu0 %v35
    %472 = vmatprep.subr.mxu0 0.0
    %473 = vmatpush1.msra.mxu0 %v36
    %474 = vmatprep.subr.mxu0 0.0
    %475 = vmatpush1.msra.mxu0 0.0
    %476 = vmatprep.subr.mxu0 0.0
    %477 = vmatpush1.msra.mxu0 0.0
    %478 = vmatprep.subr.mxu0 0.0
    %479 = vmatpush1.msra.mxu0 0.0
    %480 = vmatprep.subr.mxu0 0.0
    %481 = vmatpush1.msra.mxu0 0.0
    %482 = vmatprep.subr.mxu0 0.0
    %483 = vmatpush1.msra.mxu0 0.0
    %484 = vmatprep.subr.mxu0 0.0
    %485 = vmatpush1.msra.mxu0 0.0
    %486 = vmatprep.subr.mxu0 0.0
    %487 = vmatpush1.msra.mxu0 0.0
    %488 = vmatprep.subr.mxu0 0.0
    %489 = vmatpush1.msra.mxu0 0.0
    %490 = vmatprep.subr.mxu0 0.0
    %491 = vmatpush1.msra.mxu0 0.0
    %492 = vmatprep.subr.mxu0 0.0
    %493 = vmatpush1.msra.mxu0 0.0
    %494 = vmatprep.subr.mxu0 0.0
    %495 = vmatpush1.msra.mxu0 0.0
    %496 = vmatprep.subr.mxu0 0.0
    %497 = vmatpush1.msra.mxu0 0.0
    %498 = vmatprep.subr.mxu0 0.0
    %499 = vmatpush1.msra.mxu0 0.0
    %500 = vmatprep.subr.mxu0 0.0
    %501 = vmatpush1.msra.mxu0 0.0
    %502 = vmatprep.subr.mxu0 0.0
    %503 = vmatpush1.msra.mxu0 0.0
    %504 = vmatprep.subr.mxu0 0.0
    %505 = vmatpush1.msra.mxu0 0.0
    %506 = vmatprep.subr.mxu0 0.0
    %507 = vmatpush1.msra.mxu0 0.0
    %508 = vmatprep.subr.mxu0 0.0
    %509 = vmatpush1.msra.mxu0 0.0
    %510 = vmatprep.subr.mxu0 0.0
    %511 = vmatpush1.msra.mxu0 0.0
    %512 = vmatprep.subr.mxu0 0.0
    %513 = vmatpush1.msra.mxu0 0.0
    %514 = vmatprep.subr.mxu0 0.0
    %515 = vmatpush1.msra.mxu0 0.0
    %516 = vmatprep.subr.mxu0 0.0
    %517 = vmatpush1.msra.mxu0 0.0
    %518 = vmatprep.subr.mxu0 0.0
    %519 = vmatpush1.msra.mxu0 0.0
    %520 = vmatprep.subr.mxu0 0.0
    %521 = vmatpush1.msra.mxu0 0.0
    %522 = vmatprep.subr.mxu0 0.0
    %523 = vmatpush1.msra.mxu0 0.0
    %524 = vmatprep.subr.mxu0 0.0
    %525 = vmatpush1.msra.mxu0 0.0
    %526 = vmatprep.subr.mxu0 0.0
    %527 = vmatpush1.msra.mxu0 0.0
    %528 = vmatprep.subr.mxu0 0.0
    %529 = vmatpush1.msra.mxu0 0.0
    %530 = vmatprep.subr.mxu0 0.0
    %531 = vmatpush1.msra.mxu0 0.0
    %532 = vmatprep.subr.mxu0 0.0
    %533 = vmatpush1.msra.mxu0 0.0
    %534 = vmatprep.mubr.f32.mxu0 0.0
    %535 = vmatmul.mubr.f32.gmra.mrb[0].mxu0 %v453
    %v536 = vpop.f32.mrb[0].mxu0
    %v537 = vpop.f32.mrb[0].mxu0
    %538 = vmatprep.mubr.f32.mxu0 0.0
    %539 = vmatmul.mubr.f32.gmra.mrb[0].mxu0 %v456
    %v540 = vpop.f32.mrb[0].mxu0
    %v541 = vpop.f32.mrb[0].mxu0
    %542 = vmatprep.mubr.f32.mxu0 0.0
    %543 = vmatmul.mubr.f32.gmra.mrb[0].mxu0 %v459
    %v544 = vpop.f32.mrb[0].mxu0
    %v545 = vadd.f32 0.0, %v544
    %v546 = vpop.f32.mrb[0].mxu0
    %547 = vmatprep.mubr.f32.mxu0 0.0
    %548 = vmatmul.mubr.f32.gmra.mrb[0].mxu0 %v462
    %v549 = vpop.f32.mrb[0].mxu0
    %v550 = vadd.f32 0.0, %v549
    %v551 = vpop.f32.mrb[0].mxu0
    %552 = vmatprep.mubr.f32.mxu0 0.0
    %553 = vmatmul.mubr.f32.gmra.mrb[0].mxu0 %v465
    %v554 = vpop.f32.mrb[0].mxu0
    %v555 = vadd.f32 0.0, %v554
    %v556 = vpop.f32.mrb[0].mxu0
    %557 = vmatprep.mubr.f32.mxu0 0.0
    %558 = vmatmul.mubr.f32.gmra.mrb[0].mxu0 %v468
    %v559 = vpop.f32.mrb[0].mxu0
    %v560 = vadd.f32 0.0, %v559
    %v561 = vpop.f32.mrb[0].mxu0
    %562 = vdwg.mxu0
    %563 = vst.msk [vmem:[#allocation2] sm:$0xff] %vm176, %v545
    %564 = vst.msk [vmem:[#allocation2 + $0x8] sm:$0xff] %vm176, %v550
    %567 = vrot.lane.b32.xlu0 %v545, 112
    %v568 = vpop.permute.xlu0 %567
    %569 = vrot.lane.b32.xlu0 %v550, 112
    %v570 = vpop.permute.xlu0 %569
    %573 = vst.msk [vmem:[#allocation2 + $0x10] sm:$0xff] %vm176, %v568
    %574 = vst.msk [vmem:[#allocation2 + $0x18] sm:$0xff] %vm176, %v570
    %577 = vrot.lane.b32.xlu0 %v555, 96
    %v578 = vpop.permute.xlu0 %577
    %579 = vrot.lane.b32.xlu0 %v560, 96
    %v580 = vpop.permute.xlu0 %579
    %583 = vst.msk [vmem:[#allocation2 + $0x20] sm:$0xff] %vm176, %v578
    %584 = vst.msk [vmem:[#allocation2 + $0x28] sm:$0xff] %vm176, %v580
    %585 = vrot.lane.b32.xlu0 %v545, 80
    %v586 = vpop.permute.xlu0 %585
    %587 = vrot.lane.b32.xlu0 %v550, 80
    %v588 = vpop.permute.xlu0 %587
    %591 = vst.msk [vmem:[#allocation2 + $0x30] sm:$0xff] %vm176, %v586
    %592 = vst.msk [vmem:[#allocation2 + $0x38] sm:$0xff] %vm176, %v588
    %v593 = vld [vmem:[#allocation2] sm:$0xff]
    %v594 = vld [vmem:[#allocation2 + $0x8] sm:$0xff]
    %v595 = vld [vmem:[#allocation2 + $0x10] sm:$0xff]
    %v596 = vld [vmem:[#allocation2 + $0x18] sm:$0xff]
    %v597 = vld [vmem:[#allocation2 + $0x20] sm:$0xff]
    %v598 = vld [vmem:[#allocation2 + $0x28] sm:$0xff]
    %v599 = vld [vmem:[#allocation2 + $0x30] sm:$0xff]
    %v600 = vld [vmem:[#allocation2 + $0x38] sm:$0xff]
    %601 = vmatprep.subr.mxu0 0.0
    %602 = vmatpush1.msra.mxu0 %v593
    %603 = vmatprep.subr.mxu0 0.0
    %604 = vmatpush1.msra.mxu0 %v594
    %605 = vmatprep.subr.mxu0 0.0
    %606 = vmatpush1.msra.mxu0 %v595
    %607 = vmatprep.subr.mxu0 0.0
    %608 = vmatpush1.msra.mxu0 %v596
    %609 = vmatprep.subr.mxu0 0.0
    %610 = vmatpush1.msra.mxu0 %v597
    %611 = vmatprep.subr.mxu0 0.0
    %612 = vmatpush1.msra.mxu0 %v598
    %613 = vmatprep.subr.mxu0 0.0
    %614 = vmatpush1.msra.mxu0 %v599
    %615 = vmatprep.subr.mxu0 0.0
    %616 = vmatpush1.msra.mxu0 %v600
    %617 = vmatprep.subr.mxu0 0.0
    %618 = vmatpush1.msra.mxu0 0.0
    %619 = vmatprep.subr.mxu0 0.0
    %620 = vmatpush1.msra.mxu0 0.0
    %621 = vmatprep.subr.mxu0 0.0
    %622 = vmatpush1.msra.mxu0 0.0
    %623 = vmatprep.subr.mxu0 0.0
    %624 = vmatpush1.msra.mxu0 0.0
    %625 = vmatprep.subr.mxu0 0.0
    %626 = vmatpush1.msra.mxu0 0.0
    %627 = vmatprep.subr.mxu0 0.0
    %628 = vmatpush1.msra.mxu0 0.0
    %629 = vmatprep.subr.mxu0 0.0
    %630 = vmatpush1.msra.mxu0 0.0
    %631 = vmatprep.subr.mxu0 0.0
    %632 = vmatpush1.msra.mxu0 0.0
    %633 = vmatprep.subr.mxu0 0.0
    %634 = vmatpush1.msra.mxu0 0.0
    %635 = vmatprep.subr.mxu0 0.0
    %636 = vmatpush1.msra.mxu0 0.0
    %637 = vmatprep.subr.mxu0 0.0
    %638 = vmatpush1.msra.mxu0 0.0
    %639 = vmatprep.subr.mxu0 0.0
    %640 = vmatpush1.msra.mxu0 0.0
    %641 = vmatprep.subr.mxu0 0.0
    %642 = vmatpush1.msra.mxu0 0.0
    %643 = vmatprep.subr.mxu0 0.0
    %644 = vmatpush1.msra.mxu0 0.0
    %645 = vmatprep.subr.mxu0 0.0
    %646 = vmatpush1.msra.mxu0 0.0
    %647 = vmatprep.subr.mxu0 0.0
    %648 = vmatpush1.msra.mxu0 0.0
    %649 = vmatprep.subr.mxu0 0.0
    %650 = vmatpush1.msra.mxu0 0.0
    %651 = vmatprep.subr.mxu0 0.0
    %652 = vmatpush1.msra.mxu0 0.0
    %653 = vmatprep.subr.mxu0 0.0
    %654 = vmatpush1.msra.mxu0 0.0
    %655 = vmatprep.subr.mxu0 0.0
    %656 = vmatpush1.msra.mxu0 0.0
    %657 = vmatprep.subr.mxu0 0.0
    %658 = vmatpush1.msra.mxu0 0.0
    %659 = vmatprep.subr.mxu0 0.0
    %660 = vmatpush1.msra.mxu0 0.0
    %661 = vmatprep.subr.mxu0 0.0
    %662 = vmatpush1.msra.mxu0 0.0
    %663 = vmatprep.subr.mxu0 0.0
    %664 = vmatpush1.msra.mxu0 0.0
    %665 = vmatprep.mubr.f32.mxu0 0.0
    %666 = vmatmul.mubr.f32.gmra.mrb[0].mxu0 %v328
    %v667 = vpop.f32.mrb[0].mxu0
    %v668 = vadd.f32 %v37, %v667
    %v669 = vpop.f32.mrb[0].mxu0
    %670 = vmatprep.mubr.f32.mxu0 0.0
    %671 = vmatmul.mubr.f32.gmra.mrb[0].mxu0 %v331
    %v672 = vpop.f32.mrb[0].mxu0
    %v673 = vadd.f32 %v38, %v672
    %v674 = vpop.f32.mrb[0].mxu0
    %675 = vmatprep.mubr.f32.mxu0 0.0
    %676 = vmatmul.mubr.f32.gmra.mrb[0].mxu0 %v334
    %v677 = vpop.f32.mrb[0].mxu0
    %v678 = vadd.f32 %v39, %v677
    %v679 = vpop.f32.mrb[0].mxu0
    %680 = vmatprep.mubr.f32.mxu0 0.0
    %681 = vmatmul.mubr.f32.gmra.mrb[0].mxu0 %v337
    %v682 = vpop.f32.mrb[0].mxu0
    %v683 = vadd.f32 %v40, %v682
    %v684 = vpop.f32.mrb[0].mxu0
    %685 = vmatprep.mubr.f32.mxu0 0.0
    %686 = vmatmul.mubr.f32.gmra.mrb[0].mxu0 %v340
    %v687 = vpop.f32.mrb[0].mxu0
    %v688 = vadd.f32 %v41, %v687
    %v689 = vpop.f32.mrb[0].mxu0
    %690 = vmatprep.mubr.f32.mxu0 0.0
    %691 = vmatmul.mubr.f32.gmra.mrb[0].mxu0 %v343
    %v692 = vpop.f32.mrb[0].mxu0
    %v693 = vadd.f32 %v42, %v692
    %v694 = vpop.f32.mrb[0].mxu0
    %695 = vdwg.mxu0
    %v696 = vadd.f32 %v668, %v446
    %v697 = vadd.f32 %v673, %v447
    %v698 = vadd.f32 %v678, %v448
    %v699 = vadd.f32 %v683, %v449
    %v700 = vadd.f32 %v688, %v450
    %v701 = vadd.f32 %v693, %v451
    %v702 = vlaneseq
    %v703 = vshrl.u32 %v702, 7
    %v704 = vsub.s32 0, %v703
    %v705 = vrot.slane %v45, %v704
    %v707 = vsel %vm176, %v696, 0
    %v710 = vsel %vm176, %v697, 0
    %v713 = vsel %vm176, %v698, 0
    %v716 = vsel %vm176, %v699, 0
    %v719 = vsel %vm176, %v700, 0
    %v722 = vsel %vm176, %v701, 0
    %724 = vmatprep.subr.mxu0 0.0
    %725 = vmatpush1.msra.mxu0 %v43
    %726 = vmatprep.subr.mxu0 0.0
    %727 = vmatpush1.msra.mxu0 %v44
    %728 = vmatprep.subr.mxu0 0.0
    %729 = vmatpush1.msra.mxu0 0.0
    %730 = vmatprep.subr.mxu0 0.0
    %731 = vmatpush1.msra.mxu0 0.0
    %732 = vmatprep.subr.mxu0 0.0
    %733 = vmatpush1.msra.mxu0 0.0
    %734 = vmatprep.subr.mxu0 0.0
    %735 = vmatpush1.msra.mxu0 0.0
    %736 = vmatprep.subr.mxu0 0.0
    %737 = vmatpush1.msra.mxu0 0.0
    %738 = vmatprep.subr.mxu0 0.0
    %739 = vmatpush1.msra.mxu0 0.0
    %740 = vmatprep.subr.mxu0 0.0
    %741 = vmatpush1.msra.mxu0 0.0
    %742 = vmatprep.subr.mxu0 0.0
    %743 = vmatpush1.msra.mxu0 0.0
    %744 = vmatprep.subr.mxu0 0.0
    %745 = vmatpush1.msra.mxu0 0.0
    %746 = vmatprep.subr.mxu0 0.0
    %747 = vmatpush1.msra.mxu0 0.0
    %748 = vmatprep.subr.mxu0 0.0
    %749 = vmatpush1.msra.mxu0 0.0
    %750 = vmatprep.subr.mxu0 0.0
    %751 = vmatpush1.msra.mxu0 0.0
    %752 = vmatprep.subr.mxu0 0.0
    %753 = vmatpush1.msra.mxu0 0.0
    %754 = vmatprep.subr.mxu0 0.0
    %755 = vmatpush1.msra.mxu0 0.0
    %756 = vmatprep.subr.mxu0 0.0
    %757 = vmatpush1.msra.mxu0 0.0
    %758 = vmatprep.subr.mxu0 0.0
    %759 = vmatpush1.msra.mxu0 0.0
    %760 = vmatprep.subr.mxu0 0.0
    %761 = vmatpush1.msra.mxu0 0.0
    %762 = vmatprep.subr.mxu0 0.0
    %763 = vmatpush1.msra.mxu0 0.0
    %764 = vmatprep.subr.mxu0 0.0
    %765 = vmatpush1.msra.mxu0 0.0
    %766 = vmatprep.subr.mxu0 0.0
    %767 = vmatpush1.msra.mxu0 0.0
    %768 = vmatprep.subr.mxu0 0.0
    %769 = vmatpush1.msra.mxu0 0.0
    %770 = vmatprep.subr.mxu0 0.0
    %771 = vmatpush1.msra.mxu0 0.0
    %772 = vmatprep.subr.mxu0 0.0
    %773 = vmatpush1.msra.mxu0 0.0
    %774 = vmatprep.subr.mxu0 0.0
    %775 = vmatpush1.msra.mxu0 0.0
    %776 = vmatprep.subr.mxu0 0.0
    %777 = vmatpush1.msra.mxu0 0.0
    %778 = vmatprep.subr.mxu0 0.0
    %779 = vmatpush1.msra.mxu0 0.0
    %780 = vmatprep.subr.mxu0 0.0
    %781 = vmatpush1.msra.mxu0 0.0
    %782 = vmatprep.subr.mxu0 0.0
    %783 = vmatpush1.msra.mxu0 0.0
    %784 = vmatprep.subr.mxu0 0.0
    %785 = vmatpush1.msra.mxu0 0.0
    %786 = vmatprep.subr.mxu0 0.0
    %787 = vmatpush1.msra.mxu0 0.0
    %788 = vmatprep.mubr.f32.mxu0 0.0
    %789 = vmatmul.mubr.f32.gmra.mrb[0].mxu0 %v707
    %v790 = vpop.f32.mrb[0].mxu0
    %v791 = vadd.f32 %v705, %v790
    %v792 = vpop.f32.mrb[0].mxu0
    %793 = vmatprep.mubr.f32.mxu0 0.0
    %794 = vmatmul.mubr.f32.gmra.mrb[0].mxu0 %v710
    %v795 = vpop.f32.mrb[0].mxu0
    %v796 = vadd.f32 %v705, %v795
    %v797 = vpop.f32.mrb[0].mxu0
    %798 = vmatprep.mubr.f32.mxu0 0.0
    %799 = vmatmul.mubr.f32.gmra.mrb[0].mxu0 %v713
    %v800 = vpop.f32.mrb[0].mxu0
    %v801 = vadd.f32 %v705, %v800
    %v802 = vpop.f32.mrb[0].mxu0
    %803 = vmatprep.mubr.f32.mxu0 0.0
    %804 = vmatmul.mubr.f32.gmra.mrb[0].mxu0 %v716
    %v805 = vpop.f32.mrb[0].mxu0
    %v806 = vadd.f32 %v705, %v805
    %v807 = vpop.f32.mrb[0].mxu0
    %808 = vmatprep.mubr.f32.mxu0 0.0
    %809 = vmatmul.mubr.f32.gmra.mrb[0].mxu0 %v719
    %v810 = vpop.f32.mrb[0].mxu0
    %v811 = vadd.f32 %v705, %v810
    %v812 = vpop.f32.mrb[0].mxu0
    %813 = vmatprep.mubr.f32.mxu0 0.0
    %814 = vmatmul.mubr.f32.gmra.mrb[0].mxu0 %v722
    %v815 = vpop.f32.mrb[0].mxu0
    %v816 = vadd.f32 %v705, %v815
    %v817 = vpop.f32.mrb[0].mxu0
    %818 = vdwg.mxu0
    %819 = vst.msk [vmem:[#allocation3] sm:$0xff] %vm62, %v791
    %820 = vst.msk [vmem:[#allocation3 + $0x8] sm:$0xff] %vm62, %v796
    %821 = vst.msk [vmem:[#allocation5] sm:$0xff] %vm62, %v801
    %822 = vst.msk [vmem:[#allocation5 + $0x8] sm:$0xff] %vm62, %v806
    %823 = vst.msk [vmem:[#allocation7] sm:$0xff] %vm62, %v811
    %824 = vst.msk [vmem:[#allocation7 + $0x8] sm:$0xff] %vm62, %v816
    // Predicated region
    $region18: #{tpu_custom_call.1} parent=1 // pred_check
      _
    $region19: #{tpu_custom_call.1} parent=1 // pred_check_branch
      %826 = sbr.rel (0) target = $region21
    $region20: #{tpu_custom_call.1} parent=1 // pred_region
      %s828 = ssub.s32 256, 256
      %829 = vsyncadd [#allocation4], %s828
      %s830 = sshll.u32 [#allocation3], 4
      %s831 = int_to_ptr.vmem [resolvable:$true] %s830
      %836 = dma.vmem_to_hbm [thread:$0]  %s831, 256, %s4, [#allocation4], 128, 128, 8
    $region21: #{tpu_custom_call.1} parent=1 // pred_fallthru
      _
    // Predicated region
    $region22: #{tpu_custom_call.1} parent=1 // pred_check
      _
    $region23: #{tpu_custom_call.1} parent=1 // pred_check_branch
      %838 = sbr.rel (0) target = $region25
    $region24: #{tpu_custom_call.1} parent=1 // pred_region
      %s840 = ssub.s32 256, 256
      %841 = vsyncadd [#allocation6], %s840
      %s842 = sshll.u32 [#allocation5], 4
      %s843 = int_to_ptr.vmem [resolvable:$true] %s842
      %848 = dma.vmem_to_hbm [thread:$0]  %s843, 256, %s5, [#allocation6], 128, 128, 8
    $region25: #{tpu_custom_call.1} parent=1 // pred_fallthru
      _
    // Predicated region
    $region26: #{tpu_custom_call.1} parent=1 // pred_check
      _
    $region27: #{tpu_custom_call.1} parent=1 // pred_check_branch
      %850 = sbr.rel (0) target = $region29
    $region28: #{tpu_custom_call.1} parent=1 // pred_region
      %s852 = ssub.s32 256, 256
      %853 = vsyncadd [#allocation6], %s852
      %s854 = sshll.u32 [#allocation7], 4
      %s855 = int_to_ptr.vmem [resolvable:$true] %s854
      %860 = dma.vmem_to_hbm [thread:$0]  %s855, 256, %s6, [#allocation6], 128, 128, 8
    $region29: #{tpu_custom_call.1} parent=1 // pred_fallthru
      _
    // Predicated region
    $region30: #{tpu_custom_call.1} parent=1 // pred_check
      _
    $region31: #{tpu_custom_call.1} parent=1 // pred_check_branch
      %862 = sbr.rel (0) target = $region33
    $region32: #{tpu_custom_call.1} parent=1 // pred_region
      %863 = dma.done [#allocation4], 256
    $region33: #{tpu_custom_call.1} parent=1 // pred_fallthru
      _
    // Predicated region
    $region34: #{tpu_custom_call.1} parent=1 // pred_check
      _
    $region35: #{tpu_custom_call.1} parent=1 // pred_check_branch
      %865 = sbr.rel (0) target = $region37
    $region36: #{tpu_custom_call.1} parent=1 // pred_region
      %866 = dma.done [#allocation6], 256
    $region37: #{tpu_custom_call.1} parent=1 // pred_fallthru
      _
    // Predicated region
    $region38: #{tpu_custom_call.1} parent=1 // pred_check
      _
    $region39: #{tpu_custom_call.1} parent=1 // pred_check_branch
      %868 = sbr.rel (0) target = $region41
    $region40: #{tpu_custom_call.1} parent=1 // pred_region
      %869 = dma.done [#allocation6], 256
    $region41: #{tpu_custom_call.1} parent=1 // pred_fallthru
      _
    %870 = vsyncpa [#allocation4], 1
    %871 = vsyncpa [#allocation6], 1

</llo_original>
